<compile_context>
chip_gen: v7x
topology: tpu7x:2x2x1
jax: 0.10.0
libtpu: 0.0.40
codegen_flags: <defaults>
</compile_context>

<pallas_src>
import functools
from math import sqrt

import jax
import jax.numpy as jnp
from jax.experimental import pallas as pl
from jax.experimental.pallas import tpu as pltpu


# Safe on every generation: v5e/v6e have 128 MiB physical VMEM, v7x has 64 MiB.
_VMEM_LIMIT_BYTES = 32 * 1024 * 1024


def _default_target_block_bytes():
    # ~2 MiB blocks keep 2x(in)+2x(out) double-buffering + f32 temps well inside
    # the scoped-VMEM defaults (and v7x's 64 MiB physical VMEM).  On chips with
    # >= 128 MiB VMEM (v5e/v6e) we can afford slightly larger blocks since only
    # the scoped default binds and we raise it explicitly.
    base = 2 << 20
    try:
        info = pltpu.get_tpu_info()
        if getattr(info, "vmem_capacity_bytes", 0) >= (128 << 20):
            base = 3 << 20
    except Exception:
        pass
    return base


# ---------------------------------------------------------------------------
# Kernel A: EqualLinear  (style -> gb = [gamma | beta], shape (B, 2C))
# ---------------------------------------------------------------------------
def _style_linear_kernel(s_ref, w_ref, b_ref, gb_ref, *, scale):
    # s: (B, S), w: (S, 2C) pre-transposed, b: (1, 2C).  EqualLR scale folded
    # into the small operand.  HIGHEST precision: tiny matmul, accuracy free.
    s = s_ref[...].astype(jnp.float32) * scale
    gb = jnp.dot(s, w_ref[...].astype(jnp.float32),
                 preferred_element_type=jnp.float32,
                 precision=jax.lax.Precision.HIGHEST)
    gb_ref[...] = (gb + b_ref[...].astype(jnp.float32)).astype(gb_ref.dtype)


# ---------------------------------------------------------------------------
# Kernel B (fused path, whole HW row per block): stats + affine in one pass
# ---------------------------------------------------------------------------
def _adain_fused_kernel(x_ref, g_ref, b_ref, o_ref, *, eps, inv_hw):
    # x_ref/o_ref: (1, tile_c, HW) lane-dense.  g_ref/b_ref: (1, tile_c, 1).
    x = x_ref[...].astype(jnp.float32)
    mean = jnp.sum(x, axis=-1, keepdims=True) * inv_hw          # (1, tc, 1)
    ex2 = jnp.sum(x * x, axis=-1, keepdims=True) * inv_hw
    var = jnp.maximum(ex2 - mean * mean, 0.0)                   # single pass, no temp
    rstd = jax.lax.rsqrt(var + eps)                             # EUP slot

    gamma = g_ref[...].astype(jnp.float32)
    beta = b_ref[...].astype(jnp.float32)
    # Fold so the full-size tile only sees one mul + one add:
    #   gamma * (x - mean) * rstd + beta == x * sc + sh
    sc = gamma * rstd
    sh = beta - sc * mean
    o_ref[...] = (x * sc + sh).astype(o_ref.dtype)


# ---------------------------------------------------------------------------
# Kernel B1 (two-pass path, pass 1): per-(n,c) mean / rstd over HW tiles
# ---------------------------------------------------------------------------
def _adain_stats_kernel(x_ref, mean_ref, rstd_ref, *, eps, inv_hw, hw, tile_hw):
    # x_ref: (1, tile_c, tile_hw); mean_ref/rstd_ref: (1, tile_c, 1), resident
    # across the hw axis (index_map constant along hw) -> used as accumulators.
    hw_i = pl.program_id(2)

    @pl.when(hw_i == 0)
    def _():
        mean_ref[...] = jnp.zeros_like(mean_ref)
        rstd_ref[...] = jnp.zeros_like(rstd_ref)

    x = x_ref[...].astype(jnp.float32)
    if hw % tile_hw != 0:  # static: mask the padded tail of the last hw tile
        pos = hw_i * tile_hw + jax.lax.broadcasted_iota(jnp.int32, x.shape, 2)
        x = jnp.where(pos < hw, x, 0.0)

    mean_ref[...] += jnp.sum(x, axis=-1, keepdims=True)         # running sum
    rstd_ref[...] += jnp.sum(x * x, axis=-1, keepdims=True)     # running sum-sq

    @pl.when(hw_i == pl.num_programs(2) - 1)
    def _():
        m = mean_ref[...] * inv_hw
        v = jnp.maximum(rstd_ref[...] * inv_hw - m * m, 0.0)
        mean_ref[...] = m
        rstd_ref[...] = jax.lax.rsqrt(v + eps)


# ---------------------------------------------------------------------------
# Kernel B2 (two-pass path, pass 2): out = x * sc + sh (streaming)
# ---------------------------------------------------------------------------
def _adain_apply_kernel(x_ref, sc_ref, sh_ref, o_ref):
    x = x_ref[...].astype(jnp.float32)
    o_ref[...] = (x * sc_ref[...] + sh_ref[...]).astype(o_ref.dtype)


# ---------------------------------------------------------------------------
# Wrapper
# ---------------------------------------------------------------------------
def adaptive_instance_norm(x, style, weight_orig, bias, *, eps=1e-5,
                           target_block_bytes=None):
    """x: (B, C, H, W), style: (B, S),
       weight_orig: (2C, S) un-scaled nn.Linear weight, bias: (2C,)."""
    B, C, H, W = x.shape
    S = style.shape[1]
    HW = H * W
    scale = sqrt(2.0 / S)                 # EqualLR: fan_in = style_dim * 1
    if target_block_bytes is None:
        target_block_bytes = _default_target_block_bytes()

    # --- Kernel A: style linear -> gb (B, 2C) -------------------------------
    w_t = weight_orig.T.astype(jnp.float32)          # (S, 2C), prep once
    b2 = bias.reshape(1, 2 * C).astype(jnp.float32)
    gb = pl.pallas_call(
        functools.partial(_style_linear_kernel, scale=scale),
        out_shape=jax.ShapeDtypeStruct((B, 2 * C), jnp.float32),
        grid=(1,),
        in_specs=[pl.BlockSpec((B, S), lambda i: (0, 0)),
                  pl.BlockSpec((S, 2 * C), lambda i: (0, 0)),
                  pl.BlockSpec((1, 2 * C), lambda i: (0, 0))],
        out_specs=pl.BlockSpec((B, 2 * C), lambda i: (0, 0)),
    )(style, w_t, b2)
    gamma = gb[:, :C].reshape(B, C, 1)               # channels on sublane axis
    beta = gb[:, C:].reshape(B, C, 1)

    # Lane-dense view (free reshape of contiguous NCHW).
    x3 = x.reshape(B, C, HW)
    itemsize = jnp.dtype(x.dtype).itemsize
    align = max(8, 32 // itemsize)                   # 8 f32 / 16 bf16 / 32 int8
    bpc = HW * itemsize                              # bytes per channel row
    inv_hw = 1.0 / HW

    # Tile sizing: budget enforced AFTER alignment (round DOWN, never up).
    if C * bpc <= target_block_bytes:
        tile_c = C                                   # whole (C, HW) slab fits
    elif align * bpc <= target_block_bytes:
        tile_c = (target_block_bytes // bpc) // align * align   # >= align
    else:
        tile_c = 0                                   # too big -> two-pass path

    if tile_c > 0:
        # -------- fused single-pass path (small / medium HW) ----------------
        n_c = pl.cdiv(C, tile_c)
        out3 = pl.pallas_call(
            functools.partial(_adain_fused_kernel, eps=eps, inv_hw=inv_hw),
            out_shape=jax.ShapeDtypeStruct((B, C, HW), x.dtype),
            grid=(B, n_c),
            in_specs=[pl.BlockSpec((1, tile_c, HW), lambda b, c: (b, c, 0)),
                      pl.BlockSpec((1, tile_c, 1), lambda b, c: (b, c, 0)),
                      pl.BlockSpec((1, tile_c, 1), lambda b, c: (b, c, 0))],
            out_specs=pl.BlockSpec((1, tile_c, HW), lambda b, c: (b, c, 0)),
            compiler_params=pltpu.CompilerParams(
                dimension_semantics=("parallel", "parallel"),
                vmem_limit_bytes=_VMEM_LIMIT_BYTES),
        )(x3, gamma, beta)
        return out3.reshape(B, C, H, W)

    # -------- two-pass path (large HW): per-block VMEM independent of HW ----
    tile_c = min(C, align)
    budget_hw = max(1, target_block_bytes // (tile_c * itemsize))
    if budget_hw >= HW:
        tile_hw = HW
    else:
        tile_hw = min(HW, max(128, (budget_hw // 128) * 128))
    n_c = pl.cdiv(C, tile_c)
    n_hw = pl.cdiv(HW, tile_hw)

    # Pass 1: per-(n,c) mean / rstd, accumulated in resident output blocks.
    mean, rstd = pl.pallas_call(
        functools.partial(_adain_stats_kernel, eps=eps, inv_hw=inv_hw,
                          hw=HW, tile_hw=tile_hw),
        out_shape=(jax.ShapeDtypeStruct((B, C, 1), jnp.float32),
                   jax.ShapeDtypeStruct((B, C, 1), jnp.float32)),
        grid=(B, n_c, n_hw),
        in_specs=[pl.BlockSpec((1, tile_c, tile_hw), lambda b, c, h: (b, c, h))],
        out_specs=(pl.BlockSpec((1, tile_c, 1), lambda b, c, h: (b, c, 0)),
                   pl.BlockSpec((1, tile_c, 1), lambda b, c, h: (b, c, 0))),
        compiler_params=pltpu.CompilerParams(
            dimension_semantics=("parallel", "parallel", "arbitrary"),
            vmem_limit_bytes=_VMEM_LIMIT_BYTES),
    )(x3)

    # Fold per-channel scale/shift on tiny (B, C, 1) arrays in the wrapper.
    sc = gamma * rstd
    sh = beta - sc * mean

    # Pass 2: streaming out = x * sc + sh.
    out3 = pl.pallas_call(
        _adain_apply_kernel,
        out_shape=jax.ShapeDtypeStruct((B, C, HW), x.dtype),
        grid=(B, n_c, n_hw),
        in_specs=[pl.BlockSpec((1, tile_c, tile_hw), lambda b, c, h: (b, c, h)),
                  pl.BlockSpec((1, tile_c, 1), lambda b, c, h: (b, c, 0)),
                  pl.BlockSpec((1, tile_c, 1), lambda b, c, h: (b, c, 0))],
        out_specs=pl.BlockSpec((1, tile_c, tile_hw), lambda b, c, h: (b, c, h)),
        compiler_params=pltpu.CompilerParams(
            dimension_semantics=("parallel", "parallel", "parallel"),
            vmem_limit_bytes=_VMEM_LIMIT_BYTES),
    )(x3, sc, sh)
    return out3.reshape(B, C, H, W)


# ---------------------------------------------------------------------------
# Pure-JAX reference (sanity check only)
# ---------------------------------------------------------------------------
def _reference(x, style, weight_orig, bias, eps=1e-5):
    B, C, H, W = x.shape
    S = style.shape[1]
    w = weight_orig * sqrt(2.0 / S)
    gb = jnp.dot(style, w.T, precision=jax.lax.Precision.HIGHEST) + bias
    gamma = gb[:, :C].reshape(B, C, 1, 1)
    beta = gb[:, C:].reshape(B, C, 1, 1)
    mean = jnp.mean(x, axis=(2, 3), keepdims=True)
    var = jnp.mean(jnp.square(x - mean), axis=(2, 3), keepdims=True)
    norm = (x - mean) * jax.lax.rsqrt(var + eps)
    return gamma * norm + beta


if __name__ == "__main__":
    key = jax.random.PRNGKey(0)
    k_x, k_s, k_w, k_x2, k_s2, k_w2 = jax.random.split(key, 6)

    # --- Case 1: default fused single-pass path ------------------------------
    B, C, H, W, S = 2, 4, 16, 16, 32
    x = jax.random.normal(k_x, (B, C, H, W), dtype=jnp.float32)
    style = jax.random.normal(k_s, (B, S), dtype=jnp.float32)
    # Deterministic params matching the PyTorch __init__:
    #   linear.weight.data.normal_() -> (2C, S) ~ N(0,1); bias[:C]=1, bias[C:]=0
    weight_orig = jax.random.normal(k_w, (2 * C, S), dtype=jnp.float32)
    bias = jnp.concatenate([jnp.ones((C,), jnp.float32), jnp.zeros((C,), jnp.float32)])

    out = jax.block_until_ready(adaptive_instance_norm(x, style, weight_orig, bias))
    ref = _reference(x, style, weight_orig, bias)
    assert out.shape == x.shape and out.dtype == x.dtype
    assert float(jnp.max(jnp.abs(out - ref))) < 2e-4

    # --- Case 2: force the two-pass HW-tiled path (large-resolution path) ----
    out2 = jax.block_until_ready(
        adaptive_instance_norm(x, style, weight_orig, bias, target_block_bytes=512))
    assert float(jnp.max(jnp.abs(out2 - ref))) < 2e-4

    # --- Case 3: fused path with multiple channel tiles (tile_c < C) ---------
    B3, C3, H3, W3 = 2, 16, 8, 8
    x_3 = jax.random.normal(k_x2, (B3, C3, H3, W3), dtype=jnp.float32)
    style_3 = jax.random.normal(k_s2, (B3, S), dtype=jnp.float32)
    w_3 = jax.random.normal(k_w2, (2 * C3, S), dtype=jnp.float32)
    b_3 = jnp.concatenate([jnp.ones((C3,), jnp.float32), jnp.zeros((C3,), jnp.float32)])
    out_3 = jax.block_until_ready(
        adaptive_instance_norm(x_3, style_3, w_3, b_3, target_block_bytes=2048))
    ref_3 = _reference(x_3, style_3, w_3, b_3)
    assert float(jnp.max(jnp.abs(out_3 - ref_3))) < 2e-4

    print("KERNEL_OK")
</pallas_src>

<mosaic_0001>
module attributes {stable_mosaic.version = 11 : i64} {
  func.func @_style_linear_kernel(%arg0: i32, %arg1: memref<2x32xf32, #tpu.memory_space<vmem>>, %arg2: memref<32x8xf32, #tpu.memory_space<vmem>>, %arg3: memref<1x8xf32, #tpu.memory_space<vmem>>, %arg4: memref<2x8xf32, #tpu.memory_space<vmem>>) attributes {dimension_semantics = [#tpu.dimension_semantics<arbitrary>], iteration_bounds = array<i64: 1>, scalar_prefetch = 0 : i64, scratch_operands = 0 : i64, tpu.core_type = #tpu.core_type<tc>, window_params = [{pipeline_mode = #tpu.pipeline_mode<synchronous>, transform_indices = @transform_0, window_bounds = array<i64: 2, 32>}, {pipeline_mode = #tpu.pipeline_mode<synchronous>, transform_indices = @transform_1, window_bounds = array<i64: 32, 8>}, {pipeline_mode = #tpu.pipeline_mode<synchronous>, transform_indices = @transform_2, window_bounds = array<i64: 1, 8>}, {pipeline_mode = #tpu.pipeline_mode<synchronous>, transform_indices = @transform_3, window_bounds = array<i64: 2, 8>}]} {
    %c0 = arith.constant 0 : index
    %c0_0 = arith.constant 0 : index
    %0 = vector.load %arg1[%c0, %c0_0] : memref<2x32xf32, #tpu.memory_space<vmem>>, vector<2x32xf32>
    %cst = arith.constant 2.500000e-01 : f32
    %1 = vector.broadcast %cst : f32 to vector<2x32xf32>
    %2 = arith.mulf %0, %1 : vector<2x32xf32>
    %c0_1 = arith.constant 0 : index
    %c0_2 = arith.constant 0 : index
    %3 = vector.load %arg2[%c0_1, %c0_2] : memref<32x8xf32, #tpu.memory_space<vmem>>, vector<32x8xf32>
    %cst_3 = arith.constant dense<0.000000e+00> : vector<2x8xf32>
    %4 = tpu.matmul %2, %3, %cst_3 {dimension_numbers = #tpu.dot_dimension_numbers<[1], [0], [0], [1], [0, 0, 1, 1], [], []>, precision = #tpu.contract_precision<fp32>} : vector<2x32xf32>, vector<32x8xf32>, vector<2x8xf32> -> vector<2x8xf32>
    %c0_4 = arith.constant 0 : index
    %c0_5 = arith.constant 0 : index
    %5 = vector.load %arg3[%c0_4, %c0_5] : memref<1x8xf32, #tpu.memory_space<vmem>>, vector<1x8xf32>
    %6 = vector.broadcast %5 : vector<1x8xf32> to vector<2x8xf32>
    %7 = arith.addf %4, %6 : vector<2x8xf32>
    %c0_6 = arith.constant 0 : index
    %c0_7 = arith.constant 0 : index
    %8 = vector.load %arg4[%c0_6, %c0_7] : memref<2x8xf32, #tpu.memory_space<vmem>>, vector<2x8xf32>
    tpu.vector_store %arg4[%c0_6, %c0_7], %7 {strides = array<i32>} : memref<2x8xf32, #tpu.memory_space<vmem>>, vector<2x8xf32>,
    return
  }
  func.func @transform_0(%arg0: i32) -> (i32, i32) {
    %c0_i32 = arith.constant 0 : i32
    %c0_i32_0 = arith.constant 0 : i32
    %c0_i32_1 = arith.constant 0 : i32
    return %c0_i32, %c0_i32_0 : i32, i32
  }
  func.func @transform_1(%arg0: i32) -> (i32, i32) {
    %c0_i32 = arith.constant 0 : i32
    %c0_i32_0 = arith.constant 0 : i32
    %c0_i32_1 = arith.constant 0 : i32
    return %c0_i32, %c0_i32_0 : i32, i32
  }
  func.func @transform_2(%arg0: i32) -> (i32, i32) {
    %c0_i32 = arith.constant 0 : i32
    %c0_i32_0 = arith.constant 0 : i32
    %c0_i32_1 = arith.constant 0 : i32
    return %c0_i32, %c0_i32_0 : i32, i32
  }
  func.func @transform_3(%arg0: i32) -> (i32, i32) {
    %c0_i32 = arith.constant 0 : i32
    %c0_i32_0 = arith.constant 0 : i32
    %c0_i32_1 = arith.constant 0 : i32
    return %c0_i32, %c0_i32_0 : i32, i32
  }
}

</mosaic_0001>

<llo_original>
// kernel: tpu_custom_call.1
$region0: #{tpu_custom_call.1}
  #allocation0 [shape = 'u32[]', space=smem, size = 0x4, offset = 0x4, fixed_abs, tag = 'smem constant byte address 0x4 - core index']
  #allocation1 [shape = 'u32[144,128]{1,0:T(1,128)}', space=vmem, size = 0x12000, scoped, tag = 'internal scratch']
  %s0 = inlined_call_operand.vmem [shape: f32[2,32], index: 0, kind: input, shape index: {}]
  %s1 = inlined_call_operand.vmem [shape: f32[32,8], index: 1, kind: input, shape index: {}]
  %s2 = inlined_call_operand.vmem [shape: f32[1,8], index: 2, kind: input, shape index: {}]
  %s3 = inlined_call_operand.hbm [shape: f32[2,8], index: 3, kind: output, shape index: {}]
  %s4 = sld [smem:[#allocation0]]
  $region22: #{tpu_custom_call.1} parent=0
    _
  %s6 = ssub.s32 1, %s4
  %s7 = scalar_select 0, %s6, %s4
  $region1: #{tpu_custom_call.1} parent=0
    #allocation2 [shape = 'u8[1024]{0}', space=vmem, size = 0x400, scoped, tag = 'output window, operand 0, single buffered']
    #allocation3 [shape = 's32[1]{0}', space=sflag, size = 0x4, scoped, tag = 'scoped memory for tpu_custom_call.1']
    %8 = vsyncpa [#allocation3], 0
    // Predicated region
    $region2: #{tpu_custom_call.1} parent=1 // pred_check
      _
    $region3: #{tpu_custom_call.1} parent=1 // pred_check_branch
      %10 = sbr.rel (0) target = $region5
    $region4: #{tpu_custom_call.1} parent=1 // pred_region
      _
    $region5: #{tpu_custom_call.1} parent=1 // pred_fallthru
      _
    // Predicated region
    $region6: #{tpu_custom_call.1} parent=1 // pred_check
      _
    $region7: #{tpu_custom_call.1} parent=1 // pred_check_branch
      %12 = sbr.rel (0) target = $region9
    $region8: #{tpu_custom_call.1} parent=1 // pred_region
      _
    $region9: #{tpu_custom_call.1} parent=1 // pred_fallthru
      _
    // Predicated region
    $region10: #{tpu_custom_call.1} parent=1 // pred_check
      _
    $region11: #{tpu_custom_call.1} parent=1 // pred_check_branch
      %14 = sbr.rel (0) target = $region13
    $region12: #{tpu_custom_call.1} parent=1 // pred_region
      _
    $region13: #{tpu_custom_call.1} parent=1 // pred_fallthru
      _
    %v15 = vld [vmem:[%s0] sm:$0x3]
    %v16 = vmul.f32 %v15, 0.25
    %v17 = vld [vmem:[%s1] sm:$0xff]
    %v18 = vld [vmem:[%s1 + $0x8] sm:$0xff]
    %v19 = vld [vmem:[%s1 + $0x10] sm:$0xff]
    %v20 = vld [vmem:[%s1 + $0x18] sm:$0xff]
    %v21 = vld [vmem:[%s2] sm:$0x1]
    %v23 = vlaneseq
    %v24 = vshrl.u32 %v23, 7
    %v25 = vsub.s32 0, %v24
    %v26 = vrot.slane %v21, %v25
    %vm28 = vcmask 261120
    %v30 = vsel %vm28, %v16, 0
    %32 = vmatprep.subr.mxu0 0.0
    %v33 = vand.u32 %v17, 4294901760
    %34 = vmatpush1.msra.mxu0 %v33
    %35 = vmatprep.subr.mxu0 0.0
    %v36 = vand.u32 %v18, 4294901760
    %37 = vmatpush1.msra.mxu0 %v36
    %38 = vmatprep.subr.mxu0 0.0
    %v39 = vand.u32 %v19, 4294901760
    %40 = vmatpush1.msra.mxu0 %v39
    %41 = vmatprep.subr.mxu0 0.0
    %v42 = vand.u32 %v20, 4294901760
    %43 = vmatpush1.msra.mxu0 %v42
    %44 = vmatprep.subr.mxu0 0.0
    %45 = vmatpush1.msra.mxu0 0.0
    %46 = vmatprep.subr.mxu0 0.0
    %47 = vmatpush1.msra.mxu0 0.0
    %48 = vmatprep.subr.mxu0 0.0
    %49 = vmatpush1.msra.mxu0 0.0
    %50 = vmatprep.subr.mxu0 0.0
    %51 = vmatpush1.msra.mxu0 0.0
    %52 = vmatprep.subr.mxu0 0.0
    %53 = vmatpush1.msra.mxu0 0.0
    %54 = vmatprep.subr.mxu0 0.0
    %55 = vmatpush1.msra.mxu0 0.0
    %56 = vmatprep.subr.mxu0 0.0
    %57 = vmatpush1.msra.mxu0 0.0
    %58 = vmatprep.subr.mxu0 0.0
    %59 = vmatpush1.msra.mxu0 0.0
    %60 = vmatprep.subr.mxu0 0.0
    %61 = vmatpush1.msra.mxu0 0.0
    %62 = vmatprep.subr.mxu0 0.0
    %63 = vmatpush1.msra.mxu0 0.0
    %64 = vmatprep.subr.mxu0 0.0
    %65 = vmatpush1.msra.mxu0 0.0
    %66 = vmatprep.subr.mxu0 0.0
    %67 = vmatpush1.msra.mxu0 0.0
    %68 = vmatprep.subr.mxu0 0.0
    %69 = vmatpush1.msra.mxu0 0.0
    %70 = vmatprep.subr.mxu0 0.0
    %71 = vmatpush1.msra.mxu0 0.0
    %72 = vmatprep.subr.mxu0 0.0
    %73 = vmatpush1.msra.mxu0 0.0
    %74 = vmatprep.subr.mxu0 0.0
    %75 = vmatpush1.msra.mxu0 0.0
    %76 = vmatprep.subr.mxu0 0.0
    %77 = vmatpush1.msra.mxu0 0.0
    %78 = vmatprep.subr.mxu0 0.0
    %79 = vmatpush1.msra.mxu0 0.0
    %80 = vmatprep.subr.mxu0 0.0
    %81 = vmatpush1.msra.mxu0 0.0
    %82 = vmatprep.subr.mxu0 0.0
    %83 = vmatpush1.msra.mxu0 0.0
    %84 = vmatprep.subr.mxu0 0.0
    %85 = vmatpush1.msra.mxu0 0.0
    %86 = vmatprep.subr.mxu0 0.0
    %87 = vmatpush1.msra.mxu0 0.0
    %88 = vmatprep.subr.mxu0 0.0
    %89 = vmatpush1.msra.mxu0 0.0
    %90 = vmatprep.subr.mxu0 0.0
    %91 = vmatpush1.msra.mxu0 0.0
    %92 = vmatprep.subr.mxu0 0.0
    %93 = vmatpush1.msra.mxu0 0.0
    %94 = vmatprep.subr.mxu0 0.0
    %95 = vmatpush1.msra.mxu0 0.0
    %96 = vmatprep.subr.mxu0 0.0
    %97 = vmatpush1.msra.mxu0 0.0
    %98 = vmatprep.subr.mxu0 0.0
    %99 = vmatpush1.msra.mxu0 0.0
    %100 = vmatprep.mubr.f32.mxu0 0.0
    %v101 = vand.u32 %v30, 4294901760
    %v102 = vsub.f32 %v30, %v101
    %v103 = vand.u32 %v102, 4294901760
    %v104 = vsub.f32 %v102, %v103
    %v105 = vand.u32 %v104, 4294901760
    %106 = vmatmul.mubr.f32.gmra.mrb[0].mxu0 %v105
    %v107 = vpop.f32.mrb[0].mxu0
    %v108 = vadd.f32 %v26, %v107
    %v109 = vpop.f32.mrb[0].mxu0
    %110 = vdwg.mxu0
    %111 = vmatprep.subr.mxu0 0.0
    %v112 = vand.u32 %v17, 4294901760
    %v113 = vsub.f32 %v17, %v112
    %v114 = vand.u32 %v113, 4294901760
    %v115 = vsub.f32 %v113, %v114
    %v116 = vand.u32 %v115, 4294901760
    %117 = vmatpush1.msra.mxu0 %v116
    %118 = vmatprep.subr.mxu0 0.0
    %v119 = vand.u32 %v18, 4294901760
    %v120 = vsub.f32 %v18, %v119
    %v121 = vand.u32 %v120, 4294901760
    %v122 = vsub.f32 %v120, %v121
    %v123 = vand.u32 %v122, 4294901760
    %124 = vmatpush1.msra.mxu0 %v123
    %125 = vmatprep.subr.mxu0 0.0
    %v126 = vand.u32 %v19, 4294901760
    %v127 = vsub.f32 %v19, %v126
    %v128 = vand.u32 %v127, 4294901760
    %v129 = vsub.f32 %v127, %v128
    %v130 = vand.u32 %v129, 4294901760
    %131 = vmatpush1.msra.mxu0 %v130
    %132 = vmatprep.subr.mxu0 0.0
    %v133 = vand.u32 %v20, 4294901760
    %v134 = vsub.f32 %v20, %v133
    %v135 = vand.u32 %v134, 4294901760
    %v136 = vsub.f32 %v134, %v135
    %v137 = vand.u32 %v136, 4294901760
    %138 = vmatpush1.msra.mxu0 %v137
    %139 = vmatprep.subr.mxu0 0.0
    %140 = vmatpush1.msra.mxu0 0.0
    %141 = vmatprep.subr.mxu0 0.0
    %142 = vmatpush1.msra.mxu0 0.0
    %143 = vmatprep.subr.mxu0 0.0
    %144 = vmatpush1.msra.mxu0 0.0
    %145 = vmatprep.subr.mxu0 0.0
    %146 = vmatpush1.msra.mxu0 0.0
    %147 = vmatprep.subr.mxu0 0.0
    %148 = vmatpush1.msra.mxu0 0.0
    %149 = vmatprep.subr.mxu0 0.0
    %150 = vmatpush1.msra.mxu0 0.0
    %151 = vmatprep.subr.mxu0 0.0
    %152 = vmatpush1.msra.mxu0 0.0
    %153 = vmatprep.subr.mxu0 0.0
    %154 = vmatpush1.msra.mxu0 0.0
    %155 = vmatprep.subr.mxu0 0.0
    %156 = vmatpush1.msra.mxu0 0.0
    %157 = vmatprep.subr.mxu0 0.0
    %158 = vmatpush1.msra.mxu0 0.0
    %159 = vmatprep.subr.mxu0 0.0
    %160 = vmatpush1.msra.mxu0 0.0
    %161 = vmatprep.subr.mxu0 0.0
    %162 = vmatpush1.msra.mxu0 0.0
    %163 = vmatprep.subr.mxu0 0.0
    %164 = vmatpush1.msra.mxu0 0.0
    %165 = vmatprep.subr.mxu0 0.0
    %166 = vmatpush1.msra.mxu0 0.0
    %167 = vmatprep.subr.mxu0 0.0
    %168 = vmatpush1.msra.mxu0 0.0
    %169 = vmatprep.subr.mxu0 0.0
    %170 = vmatpush1.msra.mxu0 0.0
    %171 = vmatprep.subr.mxu0 0.0
    %172 = vmatpush1.msra.mxu0 0.0
    %173 = vmatprep.subr.mxu0 0.0
    %174 = vmatpush1.msra.mxu0 0.0
    %175 = vmatprep.subr.mxu0 0.0
    %176 = vmatpush1.msra.mxu0 0.0
    %177 = vmatprep.subr.mxu0 0.0
    %178 = vmatpush1.msra.mxu0 0.0
    %179 = vmatprep.subr.mxu0 0.0
    %180 = vmatpush1.msra.mxu0 0.0
    %181 = vmatprep.subr.mxu0 0.0
    %182 = vmatpush1.msra.mxu0 0.0
    %183 = vmatprep.subr.mxu0 0.0
    %184 = vmatpush1.msra.mxu0 0.0
    %185 = vmatprep.subr.mxu0 0.0
    %186 = vmatpush1.msra.mxu0 0.0
    %187 = vmatprep.subr.mxu0 0.0
    %188 = vmatpush1.msra.mxu0 0.0
    %189 = vmatprep.subr.mxu0 0.0
    %190 = vmatpush1.msra.mxu0 0.0
    %191 = vmatprep.subr.mxu0 0.0
    %192 = vmatpush1.msra.mxu0 0.0
    %193 = vmatprep.subr.mxu0 0.0
    %194 = vmatpush1.msra.mxu0 0.0
    %195 = vmatprep.mubr.f32.mxu0 0.0
    %v196 = vand.u32 %v30, 4294901760
    %197 = vmatmul.mubr.f32.gmra.mrb[0].mxu0 %v196
    %v198 = vpop.f32.mrb[0].mxu0
    %v199 = vadd.f32 %v108, %v198
    %v200 = vpop.f32.mrb[0].mxu0
    %201 = vdwg.mxu0
    %202 = vmatprep.subr.mxu0 0.0
    %v203 = vand.u32 %v17, 4294901760
    %v204 = vsub.f32 %v17, %v203
    %205 = vmatpush1.msra.mxu0 %v204
    %206 = vmatprep.subr.mxu0 0.0
    %v207 = vand.u32 %v18, 4294901760
    %v208 = vsub.f32 %v18, %v207
    %209 = vmatpush1.msra.mxu0 %v208
    %210 = vmatprep.subr.mxu0 0.0
    %v211 = vand.u32 %v19, 4294901760
    %v212 = vsub.f32 %v19, %v211
    %213 = vmatpush1.msra.mxu0 %v212
    %214 = vmatprep.subr.mxu0 0.0
    %v215 = vand.u32 %v20, 4294901760
    %v216 = vsub.f32 %v20, %v215
    %217 = vmatpush1.msra.mxu0 %v216
    %218 = vmatprep.subr.mxu0 0.0
    %219 = vmatpush1.msra.mxu0 0.0
    %220 = vmatprep.subr.mxu0 0.0
    %221 = vmatpush1.msra.mxu0 0.0
    %222 = vmatprep.subr.mxu0 0.0
    %223 = vmatpush1.msra.mxu0 0.0
    %224 = vmatprep.subr.mxu0 0.0
    %225 = vmatpush1.msra.mxu0 0.0
    %226 = vmatprep.subr.mxu0 0.0
    %227 = vmatpush1.msra.mxu0 0.0
    %228 = vmatprep.subr.mxu0 0.0
    %229 = vmatpush1.msra.mxu0 0.0
    %230 = vmatprep.subr.mxu0 0.0
    %231 = vmatpush1.msra.mxu0 0.0
    %232 = vmatprep.subr.mxu0 0.0
    %233 = vmatpush1.msra.mxu0 0.0
    %234 = vmatprep.subr.mxu0 0.0
    %235 = vmatpush1.msra.mxu0 0.0
    %236 = vmatprep.subr.mxu0 0.0
    %237 = vmatpush1.msra.mxu0 0.0
    %238 = vmatprep.subr.mxu0 0.0
    %239 = vmatpush1.msra.mxu0 0.0
    %240 = vmatprep.subr.mxu0 0.0
    %241 = vmatpush1.msra.mxu0 0.0
    %242 = vmatprep.subr.mxu0 0.0
    %243 = vmatpush1.msra.mxu0 0.0
    %244 = vmatprep.subr.mxu0 0.0
    %245 = vmatpush1.msra.mxu0 0.0
    %246 = vmatprep.subr.mxu0 0.0
    %247 = vmatpush1.msra.mxu0 0.0
    %248 = vmatprep.subr.mxu0 0.0
    %249 = vmatpush1.msra.mxu0 0.0
    %250 = vmatprep.subr.mxu0 0.0
    %251 = vmatpush1.msra.mxu0 0.0
    %252 = vmatprep.subr.mxu0 0.0
    %253 = vmatpush1.msra.mxu0 0.0
    %254 = vmatprep.subr.mxu0 0.0
    %255 = vmatpush1.msra.mxu0 0.0
    %256 = vmatprep.subr.mxu0 0.0
    %257 = vmatpush1.msra.mxu0 0.0
    %258 = vmatprep.subr.mxu0 0.0
    %259 = vmatpush1.msra.mxu0 0.0
    %260 = vmatprep.subr.mxu0 0.0
    %261 = vmatpush1.msra.mxu0 0.0
    %262 = vmatprep.subr.mxu0 0.0
    %263 = vmatpush1.msra.mxu0 0.0
    %264 = vmatprep.subr.mxu0 0.0
    %265 = vmatpush1.msra.mxu0 0.0
    %266 = vmatprep.subr.mxu0 0.0
    %267 = vmatpush1.msra.mxu0 0.0
    %268 = vmatprep.subr.mxu0 0.0
    %269 = vmatpush1.msra.mxu0 0.0
    %270 = vmatprep.subr.mxu0 0.0
    %271 = vmatpush1.msra.mxu0 0.0
    %272 = vmatprep.subr.mxu0 0.0
    %273 = vmatpush1.msra.mxu0 0.0
    %274 = vmatprep.mubr.f32.mxu0 0.0
    %v275 = vand.u32 %v30, 4294901760
    %v276 = vsub.f32 %v30, %v275
    %277 = vmatmul.mubr.f32.gmra.mrb[0].mxu0 %v276
    %v278 = vpop.f32.mrb[0].mxu0
    %v279 = vadd.f32 %v199, %v278
    %v280 = vpop.f32.mrb[0].mxu0
    %281 = vdwg.mxu0
    %282 = vmatprep.subr.mxu0 0.0
    %v283 = vand.u32 %v17, 4294901760
    %284 = vmatpush1.msra.mxu0 %v283
    %285 = vmatprep.subr.mxu0 0.0
    %v286 = vand.u32 %v18, 4294901760
    %287 = vmatpush1.msra.mxu0 %v286
    %288 = vmatprep.subr.mxu0 0.0
    %v289 = vand.u32 %v19, 4294901760
    %290 = vmatpush1.msra.mxu0 %v289
    %291 = vmatprep.subr.mxu0 0.0
    %v292 = vand.u32 %v20, 4294901760
    %293 = vmatpush1.msra.mxu0 %v292
    %294 = vmatprep.subr.mxu0 0.0
    %295 = vmatpush1.msra.mxu0 0.0
    %296 = vmatprep.subr.mxu0 0.0
    %297 = vmatpush1.msra.mxu0 0.0
    %298 = vmatprep.subr.mxu0 0.0
    %299 = vmatpush1.msra.mxu0 0.0
    %300 = vmatprep.subr.mxu0 0.0
    %301 = vmatpush1.msra.mxu0 0.0
    %302 = vmatprep.subr.mxu0 0.0
    %303 = vmatpush1.msra.mxu0 0.0
    %304 = vmatprep.subr.mxu0 0.0
    %305 = vmatpush1.msra.mxu0 0.0
    %306 = vmatprep.subr.mxu0 0.0
    %307 = vmatpush1.msra.mxu0 0.0
    %308 = vmatprep.subr.mxu0 0.0
    %309 = vmatpush1.msra.mxu0 0.0
    %310 = vmatprep.subr.mxu0 0.0
    %311 = vmatpush1.msra.mxu0 0.0
    %312 = vmatprep.subr.mxu0 0.0
    %313 = vmatpush1.msra.mxu0 0.0
    %314 = vmatprep.subr.mxu0 0.0
    %315 = vmatpush1.msra.mxu0 0.0
    %316 = vmatprep.subr.mxu0 0.0
    %317 = vmatpush1.msra.mxu0 0.0
    %318 = vmatprep.subr.mxu0 0.0
    %319 = vmatpush1.msra.mxu0 0.0
    %320 = vmatprep.subr.mxu0 0.0
    %321 = vmatpush1.msra.mxu0 0.0
    %322 = vmatprep.subr.mxu0 0.0
    %323 = vmatpush1.msra.mxu0 0.0
    %324 = vmatprep.subr.mxu0 0.0
    %325 = vmatpush1.msra.mxu0 0.0
    %326 = vmatprep.subr.mxu0 0.0
    %327 = vmatpush1.msra.mxu0 0.0
    %328 = vmatprep.subr.mxu0 0.0
    %329 = vmatpush1.msra.mxu0 0.0
    %330 = vmatprep.subr.mxu0 0.0
    %331 = vmatpush1.msra.mxu0 0.0
    %332 = vmatprep.subr.mxu0 0.0
    %333 = vmatpush1.msra.mxu0 0.0
    %334 = vmatprep.subr.mxu0 0.0
    %335 = vmatpush1.msra.mxu0 0.0
    %336 = vmatprep.subr.mxu0 0.0
    %337 = vmatpush1.msra.mxu0 0.0
    %338 = vmatprep.subr.mxu0 0.0
    %339 = vmatpush1.msra.mxu0 0.0
    %340 = vmatprep.subr.mxu0 0.0
    %341 = vmatpush1.msra.mxu0 0.0
    %342 = vmatprep.subr.mxu0 0.0
    %343 = vmatpush1.msra.mxu0 0.0
    %344 = vmatprep.subr.mxu0 0.0
    %345 = vmatpush1.msra.mxu0 0.0
    %346 = vmatprep.subr.mxu0 0.0
    %347 = vmatpush1.msra.mxu0 0.0
    %348 = vmatprep.subr.mxu0 0.0
    %349 = vmatpush1.msra.mxu0 0.0
    %350 = vmatprep.mubr.f32.mxu0 0.0
    %v351 = vand.u32 %v30, 4294901760
    %v352 = vsub.f32 %v30, %v351
    %v353 = vand.u32 %v352, 4294901760
    %354 = vmatmul.mubr.f32.gmra.mrb[0].mxu0 %v353
    %v355 = vpop.f32.mrb[0].mxu0
    %v356 = vadd.f32 %v279, %v355
    %v357 = vpop.f32.mrb[0].mxu0
    %358 = vdwg.mxu0
    %359 = vmatprep.subr.mxu0 0.0
    %v360 = vand.u32 %v17, 4294901760
    %v361 = vsub.f32 %v17, %v360
    %v362 = vand.u32 %v361, 4294901760
    %363 = vmatpush1.msra.mxu0 %v362
    %364 = vmatprep.subr.mxu0 0.0
    %v365 = vand.u32 %v18, 4294901760
    %v366 = vsub.f32 %v18, %v365
    %v367 = vand.u32 %v366, 4294901760
    %368 = vmatpush1.msra.mxu0 %v367
    %369 = vmatprep.subr.mxu0 0.0
    %v370 = vand.u32 %v19, 4294901760
    %v371 = vsub.f32 %v19, %v370
    %v372 = vand.u32 %v371, 4294901760
    %373 = vmatpush1.msra.mxu0 %v372
    %374 = vmatprep.subr.mxu0 0.0
    %v375 = vand.u32 %v20, 4294901760
    %v376 = vsub.f32 %v20, %v375
    %v377 = vand.u32 %v376, 4294901760
    %378 = vmatpush1.msra.mxu0 %v377
    %379 = vmatprep.subr.mxu0 0.0
    %380 = vmatpush1.msra.mxu0 0.0
    %381 = vmatprep.subr.mxu0 0.0
    %382 = vmatpush1.msra.mxu0 0.0
    %383 = vmatprep.subr.mxu0 0.0
    %384 = vmatpush1.msra.mxu0 0.0
    %385 = vmatprep.subr.mxu0 0.0
    %386 = vmatpush1.msra.mxu0 0.0
    %387 = vmatprep.subr.mxu0 0.0
    %388 = vmatpush1.msra.mxu0 0.0
    %389 = vmatprep.subr.mxu0 0.0
    %390 = vmatpush1.msra.mxu0 0.0
    %391 = vmatprep.subr.mxu0 0.0
    %392 = vmatpush1.msra.mxu0 0.0
    %393 = vmatprep.subr.mxu0 0.0
    %394 = vmatpush1.msra.mxu0 0.0
    %395 = vmatprep.subr.mxu0 0.0
    %396 = vmatpush1.msra.mxu0 0.0
    %397 = vmatprep.subr.mxu0 0.0
    %398 = vmatpush1.msra.mxu0 0.0
    %399 = vmatprep.subr.mxu0 0.0
    %400 = vmatpush1.msra.mxu0 0.0
    %401 = vmatprep.subr.mxu0 0.0
    %402 = vmatpush1.msra.mxu0 0.0
    %403 = vmatprep.subr.mxu0 0.0
    %404 = vmatpush1.msra.mxu0 0.0
    %405 = vmatprep.subr.mxu0 0.0
    %406 = vmatpush1.msra.mxu0 0.0
    %407 = vmatprep.subr.mxu0 0.0
    %408 = vmatpush1.msra.mxu0 0.0
    %409 = vmatprep.subr.mxu0 0.0
    %410 = vmatpush1.msra.mxu0 0.0
    %411 = vmatprep.subr.mxu0 0.0
    %412 = vmatpush1.msra.mxu0 0.0
    %413 = vmatprep.subr.mxu0 0.0
    %414 = vmatpush1.msra.mxu0 0.0
    %415 = vmatprep.subr.mxu0 0.0
    %416 = vmatpush1.msra.mxu0 0.0
    %417 = vmatprep.subr.mxu0 0.0
    %418 = vmatpush1.msra.mxu0 0.0
    %419 = vmatprep.subr.mxu0 0.0
    %420 = vmatpush1.msra.mxu0 0.0
    %421 = vmatprep.subr.mxu0 0.0
    %422 = vmatpush1.msra.mxu0 0.0
    %423 = vmatprep.subr.mxu0 0.0
    %424 = vmatpush1.msra.mxu0 0.0
    %425 = vmatprep.subr.mxu0 0.0
    %426 = vmatpush1.msra.mxu0 0.0
    %427 = vmatprep.subr.mxu0 0.0
    %428 = vmatpush1.msra.mxu0 0.0
    %429 = vmatprep.subr.mxu0 0.0
    %430 = vmatpush1.msra.mxu0 0.0
    %431 = vmatprep.subr.mxu0 0.0
    %432 = vmatpush1.msra.mxu0 0.0
    %433 = vmatprep.subr.mxu0 0.0
    %434 = vmatpush1.msra.mxu0 0.0
    %435 = vmatprep.mubr.f32.mxu0 0.0
    %v436 = vand.u32 %v30, 4294901760
    %437 = vmatmul.mubr.f32.gmra.mrb[0].mxu0 %v436
    %v438 = vpop.f32.mrb[0].mxu0
    %v439 = vadd.f32 %v356, %v438
    %v440 = vpop.f32.mrb[0].mxu0
    %441 = vdwg.mxu0
    %442 = vmatprep.subr.mxu0 0.0
    %v443 = vand.u32 %v17, 4294901760
    %444 = vmatpush1.msra.mxu0 %v443
    %445 = vmatprep.subr.mxu0 0.0
    %v446 = vand.u32 %v18, 4294901760
    %447 = vmatpush1.msra.mxu0 %v446
    %448 = vmatprep.subr.mxu0 0.0
    %v449 = vand.u32 %v19, 4294901760
    %450 = vmatpush1.msra.mxu0 %v449
    %451 = vmatprep.subr.mxu0 0.0
    %v452 = vand.u32 %v20, 4294901760
    %453 = vmatpush1.msra.mxu0 %v452
    %454 = vmatprep.subr.mxu0 0.0
    %455 = vmatpush1.msra.mxu0 0.0
    %456 = vmatprep.subr.mxu0 0.0
    %457 = vmatpush1.msra.mxu0 0.0
    %458 = vmatprep.subr.mxu0 0.0
    %459 = vmatpush1.msra.mxu0 0.0
    %460 = vmatprep.subr.mxu0 0.0
    %461 = vmatpush1.msra.mxu0 0.0
    %462 = vmatprep.subr.mxu0 0.0
    %463 = vmatpush1.msra.mxu0 0.0
    %464 = vmatprep.subr.mxu0 0.0
    %465 = vmatpush1.msra.mxu0 0.0
    %466 = vmatprep.subr.mxu0 0.0
    %467 = vmatpush1.msra.mxu0 0.0
    %468 = vmatprep.subr.mxu0 0.0
    %469 = vmatpush1.msra.mxu0 0.0
    %470 = vmatprep.subr.mxu0 0.0
    %471 = vmatpush1.msra.mxu0 0.0
    %472 = vmatprep.subr.mxu0 0.0
    %473 = vmatpush1.msra.mxu0 0.0
    %474 = vmatprep.subr.mxu0 0.0
    %475 = vmatpush1.msra.mxu0 0.0
    %476 = vmatprep.subr.mxu0 0.0
    %477 = vmatpush1.msra.mxu0 0.0
    %478 = vmatprep.subr.mxu0 0.0
    %479 = vmatpush1.msra.mxu0 0.0
    %480 = vmatprep.subr.mxu0 0.0
    %481 = vmatpush1.msra.mxu0 0.0
    %482 = vmatprep.subr.mxu0 0.0
    %483 = vmatpush1.msra.mxu0 0.0
    %484 = vmatprep.subr.mxu0 0.0
    %485 = vmatpush1.msra.mxu0 0.0
    %486 = vmatprep.subr.mxu0 0.0
    %487 = vmatpush1.msra.mxu0 0.0
    %488 = vmatprep.subr.mxu0 0.0
    %489 = vmatpush1.msra.mxu0 0.0
    %490 = vmatprep.subr.mxu0 0.0
    %491 = vmatpush1.msra.mxu0 0.0
    %492 = vmatprep.subr.mxu0 0.0
    %493 = vmatpush1.msra.mxu0 0.0
    %494 = vmatprep.subr.mxu0 0.0
    %495 = vmatpush1.msra.mxu0 0.0
    %496 = vmatprep.subr.mxu0 0.0
    %497 = vmatpush1.msra.mxu0 0.0
    %498 = vmatprep.subr.mxu0 0.0
    %499 = vmatpush1.msra.mxu0 0.0
    %500 = vmatprep.subr.mxu0 0.0
    %501 = vmatpush1.msra.mxu0 0.0
    %502 = vmatprep.subr.mxu0 0.0
    %503 = vmatpush1.msra.mxu0 0.0
    %504 = vmatprep.subr.mxu0 0.0
    %505 = vmatpush1.msra.mxu0 0.0
    %506 = vmatprep.subr.mxu0 0.0
    %507 = vmatpush1.msra.mxu0 0.0
    %508 = vmatprep.subr.mxu0 0.0
    %509 = vmatpush1.msra.mxu0 0.0
    %510 = vmatprep.mubr.f32.mxu0 0.0
    %v511 = vand.u32 %v30, 4294901760
    %512 = vmatmul.mubr.f32.gmra.mrb[0].mxu0 %v511
    %v513 = vpop.f32.mrb[0].mxu0
    %v514 = vadd.f32 %v439, %v513
    %v515 = vpop.f32.mrb[0].mxu0
    %516 = vdwg.mxu0
    %vm517 = vcmask 58368
    %518 = vst.msk [vmem:[#allocation2] sm:$0x3] %vm517, %v514
    // Predicated region
    $region14: #{tpu_custom_call.1} parent=1 // pred_check
      _
    $region15: #{tpu_custom_call.1} parent=1 // pred_check_branch
      %520 = sbr.rel (0) target = $region17
    $region16: #{tpu_custom_call.1} parent=1 // pred_region
      %s522 = ssub.s32 32, 32
      %523 = vsyncadd [#allocation3], %s522
      %s525 = sshll.u32 [#allocation2], 4
      %s526 = int_to_ptr.vmem [resolvable:$true] %s525
      %528 = dma.vmem_to_hbm [thread:$0]  %s526, 32, %s3, [#allocation3]
    $region17: #{tpu_custom_call.1} parent=1 // pred_fallthru
      _
    // Predicated region
    $region18: #{tpu_custom_call.1} parent=1 // pred_check
      _
    $region19: #{tpu_custom_call.1} parent=1 // pred_check_branch
      %530 = sbr.rel (0) target = $region21
    $region20: #{tpu_custom_call.1} parent=1 // pred_region
      %531 = dma.done [#allocation3], 32
    $region21: #{tpu_custom_call.1} parent=1 // pred_fallthru
      _
    %532 = vsyncpa [#allocation3], 1

</llo_original>
